<compile_context>
chip_gen: v6e
topology: v6e:2x2x1
jax: 0.10.0
libtpu: 0.0.40
codegen_flags: <defaults>
</compile_context>

<pallas_src>
import functools

import jax
import jax.numpy as jnp
from jax.experimental import pallas as pl
from jax.experimental.pallas import tpu as pltpu

_EPS = 1e-8
_NUM_STAT_SHARDS = 2  # leading "parallel" grid axis -> both TCs on v7x


def _round_up(x, m):
    return ((x + m - 1) // m) * m


def _pick_block_rows(n_rows, n_lanes, target_bytes=1 << 20, cap=2048):
    """Largest row tile (multiple of 8) under ~1 MiB/block, capped at 2048 rows."""
    by_vmem = max(8, (target_bytes // (n_lanes * 4)) // 8 * 8)
    return max(8, min(cap, by_vmem, _round_up(max(n_rows, 1), 8)))


# ---------------------------------------------------------------------------
# Kernel 1: batch statistics  sum(x), sum(x*x)  (reduction over rows)
# ---------------------------------------------------------------------------
def _stats_kernel(x_ref, psum_ref, psq_ref, *, block_rows, df):
    i = pl.program_id(1)

    @pl.when(i == 0)
    def _():
        psum_ref[...] = jnp.zeros_like(psum_ref)
        psq_ref[...] = jnp.zeros_like(psq_ref)

    x = x_ref[...].astype(jnp.float32)          # (block_rows, df)
    xr = x.reshape(block_rows // 8, 8, df)      # group rows into sublane tiles
    # Pure VPU cross-vreg adds; no per-step XLU sublane reduction.
    psum_ref[...] += jnp.sum(xr, axis=0)        # (8, df) resident accumulator
    psq_ref[...] += jnp.sum(xr * xr, axis=0)


def _batch_stats(xf):
    """Per-lane partial sums of a lane-dense (n, df) slab.

    Returns two (_NUM_STAT_SHARDS * 8, df) partial-sum arrays; the caller folds
    them back to per-feature (1, D) sums with a tiny JAX reduction.
    """
    nf, df = xf.shape
    block_rows = _pick_block_rows(nf, df)
    n_pad = _round_up(nf, _NUM_STAT_SHARDS * block_rows)
    if n_pad != nf:  # zero rows contribute nothing to sum / sumsq
        xf = jnp.pad(xf, ((0, n_pad - nf), (0, 0)))
    nblk_half = n_pad // (_NUM_STAT_SHARDS * block_rows)

    kernel = functools.partial(_stats_kernel, block_rows=block_rows, df=df)
    return pl.pallas_call(
        kernel,
        out_shape=(
            jax.ShapeDtypeStruct((_NUM_STAT_SHARDS * 8, df), jnp.float32),
            jax.ShapeDtypeStruct((_NUM_STAT_SHARDS * 8, df), jnp.float32),
        ),
        grid=(_NUM_STAT_SHARDS, nblk_half),
        in_specs=[
            pl.BlockSpec((block_rows, df), lambda c, i: (c * nblk_half + i, 0)),
        ],
        out_specs=(
            pl.BlockSpec((8, df), lambda c, i: (c, 0)),
            pl.BlockSpec((8, df), lambda c, i: (c, 0)),
        ),
        compiler_params=pltpu.CompilerParams(
            dimension_semantics=("parallel", "arbitrary")),
    )(xf)


# ---------------------------------------------------------------------------
# Kernel 2: normalization (pure FMA; scale/bias hoisted out of the kernel)
# ---------------------------------------------------------------------------
def _normalize_kernel(x_ref, scale_ref, bias_ref, o_ref):
    x = x_ref[...].astype(jnp.float32)
    o_ref[...] = (x * scale_ref[...] + bias_ref[...]).astype(o_ref.dtype)


def _normalize(xf, scale_f, bias_f):
    nf, df = xf.shape
    block_rows = _pick_block_rows(nf, df)
    n_pad = _round_up(nf, block_rows)
    xp = jnp.pad(xf, ((0, n_pad - nf), (0, 0))) if n_pad != nf else xf
    nblk = n_pad // block_rows

    out = pl.pallas_call(
        _normalize_kernel,
        out_shape=jax.ShapeDtypeStruct((n_pad, df), xf.dtype),
        grid=(nblk,),
        in_specs=[
            pl.BlockSpec((block_rows, df), lambda i: (i, 0)),
            pl.BlockSpec((1, df), lambda i: (0, 0)),
            pl.BlockSpec((1, df), lambda i: (0, 0)),
        ],
        out_specs=pl.BlockSpec((block_rows, df), lambda i: (i, 0)),
        compiler_params=pltpu.CompilerParams(
            dimension_semantics=("parallel",)),
    )(xp, scale_f, bias_f)
    return out[:nf] if n_pad != nf else out


# ---------------------------------------------------------------------------
# Python wrapper mirroring RunningNorm's forward semantics
# ---------------------------------------------------------------------------
class RunningNorm:
    def __init__(self, size_in):
        self.size = size_in
        # Lane-fold factor: present a 128-wide lane axis when size_in < 128.
        self.fold = 128 // size_in if (size_in < 128 and 128 % size_in == 0) else 1
        # Deterministic init (frozen parameters of the inner Normalizer).
        self.run_sum = jnp.zeros((1, size_in), jnp.float32)
        self.run_sumsq = jnp.zeros((1, size_in), jnp.float32)
        self.count = jnp.zeros((), jnp.float32)
        self.stop = False

    def stop_norm(self):
        self.stop = True

    def active(self):
        return not self.stop

    def _scale_bias(self):
        # Hoisted out of the normalize kernel: tiny (1, D) math done once.
        cnt = jnp.maximum(self.count, 1e-8)  # numerical guard only
        mean = self.run_sum / cnt
        var = jnp.maximum(self.run_sumsq / cnt - mean * mean, 0.0)
        scale = jax.lax.rsqrt(var + _EPS)
        bias = -mean * scale
        return scale, bias

    def __call__(self, states, update):
        shape = states.shape
        x = states.reshape(-1, self.size)
        n, d, k = x.shape[0], self.size, self.fold

        n_k = _round_up(n, k)
        if n_k != n:  # zero rows: harmless for sums, sliced off after normalize
            x = jnp.pad(x, ((0, n_k - n), (0, 0)))
        xf = x.reshape(n_k // k, k * d)  # lane-dense folded layout

        if update and (not self.stop):
            psum, psq = _batch_stats(xf)  # (_NUM_STAT_SHARDS*8, k*d) partials
            self.run_sum = self.run_sum + jnp.sum(
                psum.reshape(-1, d), axis=0, keepdims=True)
            self.run_sumsq = self.run_sumsq + jnp.sum(
                psq.reshape(-1, d), axis=0, keepdims=True)
            self.count = self.count + jnp.float32(n)

        scale, bias = self._scale_bias()
        scale_f = jnp.tile(scale, (1, k))  # broadcast per-feature over folded lanes
        bias_f = jnp.tile(bias, (1, k))

        out = _normalize(xf, scale_f, bias_f)
        out = out.reshape(n_k, d)[:n]
        return out.reshape(shape)


if __name__ == "__main__":
    key = jax.random.PRNGKey(0)
    size_in = 32
    # states shape (2, 4, 32) -> flattened to (8, 32) rows of size_in features
    states = jax.random.normal(key, (2, 4, size_in), dtype=jnp.float32) * 3.0 + 1.5

    rn = RunningNorm(size_in)
    out = rn(states, update=True)
    out = jax.block_until_ready(out)

    # Pure-JAX reference for sanity
    xf = states.reshape(-1, size_in).astype(jnp.float32)
    cnt = jnp.float32(xf.shape[0])
    mean = jnp.sum(xf, axis=0, keepdims=True) / cnt
    var = jnp.maximum(jnp.sum(xf * xf, axis=0, keepdims=True) / cnt - mean * mean, 0.0)
    ref = ((xf - mean) / jnp.sqrt(var + _EPS)).reshape(states.shape)

    assert out.shape == states.shape and out.dtype == states.dtype
    assert jnp.allclose(out, ref, atol=1e-4, rtol=1e-4)

    # Second call with a row count NOT divisible by the lane-fold factor
    # (exercises padding path) and accumulated running stats.
    states2 = jax.random.normal(jax.random.PRNGKey(1), (3, size_in),
                                dtype=jnp.float32) * 2.0 - 0.5
    out2 = jax.block_until_ready(rn(states2, update=True))
    x_all = jnp.concatenate([xf, states2], axis=0)
    cnt2 = jnp.float32(x_all.shape[0])
    mean2 = jnp.sum(x_all, axis=0, keepdims=True) / cnt2
    var2 = jnp.maximum(jnp.sum(x_all * x_all, axis=0, keepdims=True) / cnt2
                       - mean2 * mean2, 0.0)
    ref2 = (states2 - mean2) / jnp.sqrt(var2 + _EPS)
    assert out2.shape == states2.shape
    assert jnp.allclose(out2, ref2, atol=1e-4, rtol=1e-4)

    print("KERNEL_OK")
</pallas_src>

<mosaic_0001>
module attributes {stable_mosaic.version = 11 : i64} {
  func.func @_stats_kernel(%arg0: i32, %arg1: i32, %arg2: memref<8x128xf32, #tpu.memory_space<vmem>>, %arg3: memref<8x128xf32, #tpu.memory_space<vmem>>, %arg4: memref<8x128xf32, #tpu.memory_space<vmem>>) attributes {dimension_semantics = [#tpu.dimension_semantics<parallel>, #tpu.dimension_semantics<arbitrary>], iteration_bounds = array<i64: 2, 1>, scalar_prefetch = 0 : i64, scratch_operands = 0 : i64, tpu.core_type = #tpu.core_type<tc>, window_params = [{transform_indices = @transform_0, window_bounds = array<i64: 8, 128>}, {transform_indices = @transform_1, window_bounds = array<i64: 8, 128>}, {transform_indices = @transform_2, window_bounds = array<i64: 8, 128>}]} {
    %c0_i32 = arith.constant 0 : i32
    %0 = arith.cmpi eq, %arg1, %c0_i32 : i32
    %1 = arith.extui %0 : i1 to i32
    %c0_i32_0 = arith.constant 0 : i32
    %2 = arith.cmpi ne, %1, %c0_i32_0 : i32
    scf.if %2 {
      %cst_11 = arith.constant 0.000000e+00 : f32
      %14 = vector.broadcast %cst_11 : f32 to vector<8x128xf32>
      %c0_12 = arith.constant 0 : index
      %c0_13 = arith.constant 0 : index
      %15 = vector.load %arg3[%c0_12, %c0_13] : memref<8x128xf32, #tpu.memory_space<vmem>>, vector<8x128xf32>
      tpu.vector_store %arg3[%c0_12, %c0_13], %14 {strides = array<i32>} : memref<8x128xf32, #tpu.memory_space<vmem>>, vector<8x128xf32>,
      %cst_14 = arith.constant 0.000000e+00 : f32
      %16 = vector.broadcast %cst_14 : f32 to vector<8x128xf32>
      %c0_15 = arith.constant 0 : index
      %c0_16 = arith.constant 0 : index
      %17 = vector.load %arg4[%c0_15, %c0_16] : memref<8x128xf32, #tpu.memory_space<vmem>>, vector<8x128xf32>
      tpu.vector_store %arg4[%c0_15, %c0_16], %16 {strides = array<i32>} : memref<8x128xf32, #tpu.memory_space<vmem>>, vector<8x128xf32>,
    } else {
    }
    %c0 = arith.constant 0 : index
    %c0_1 = arith.constant 0 : index
    %3 = vector.load %arg2[%c0, %c0_1] : memref<8x128xf32, #tpu.memory_space<vmem>>, vector<8x128xf32>
    %4 = vector.shape_cast %3 : vector<8x128xf32> to vector<1x8x128xf32>
    %c0_2 = arith.constant 0 : index
    %c0_3 = arith.constant 0 : index
    %5 = vector.load %arg3[%c0_2, %c0_3] : memref<8x128xf32, #tpu.memory_space<vmem>>, vector<8x128xf32>
    %cst = arith.constant dense<0.000000e+00> : vector<8x128xf32>
    %6 = vector.multi_reduction <add>, %4, %cst [0] : vector<1x8x128xf32> to vector<8x128xf32>
    %7 = arith.addf %5, %6 : vector<8x128xf32>
    %c0_4 = arith.constant 0 : index
    %c0_5 = arith.constant 0 : index
    %8 = vector.load %arg3[%c0_4, %c0_5] : memref<8x128xf32, #tpu.memory_space<vmem>>, vector<8x128xf32>
    tpu.vector_store %arg3[%c0_4, %c0_5], %7 {strides = array<i32>} : memref<8x128xf32, #tpu.memory_space<vmem>>, vector<8x128xf32>,
    %c0_6 = arith.constant 0 : index
    %c0_7 = arith.constant 0 : index
    %9 = vector.load %arg4[%c0_6, %c0_7] : memref<8x128xf32, #tpu.memory_space<vmem>>, vector<8x128xf32>
    %10 = arith.mulf %4, %4 : vector<1x8x128xf32>
    %cst_8 = arith.constant dense<0.000000e+00> : vector<8x128xf32>
    %11 = vector.multi_reduction <add>, %10, %cst_8 [0] : vector<1x8x128xf32> to vector<8x128xf32>
    %12 = arith.addf %9, %11 : vector<8x128xf32>
    %c0_9 = arith.constant 0 : index
    %c0_10 = arith.constant 0 : index
    %13 = vector.load %arg4[%c0_9, %c0_10] : memref<8x128xf32, #tpu.memory_space<vmem>>, vector<8x128xf32>
    tpu.vector_store %arg4[%c0_9, %c0_10], %12 {strides = array<i32>} : memref<8x128xf32, #tpu.memory_space<vmem>>, vector<8x128xf32>,
    return
  }
  func.func @transform_0(%arg0: i32, %arg1: i32) -> (i32, i32) {
    %c1_i32 = arith.constant 1 : i32
    %0 = arith.muli %arg0, %c1_i32 : i32
    %1 = arith.addi %0, %arg1 : i32
    %c0_i32 = arith.constant 0 : i32
    %c0_i32_0 = arith.constant 0 : i32
    return %1, %c0_i32 : i32, i32
  }
  func.func @transform_1(%arg0: i32, %arg1: i32) -> (i32, i32) {
    %c0_i32 = arith.constant 0 : i32
    %c0_i32_0 = arith.constant 0 : i32
    return %arg0, %c0_i32 : i32, i32
  }
  func.func @transform_2(%arg0: i32, %arg1: i32) -> (i32, i32) {
    %c0_i32 = arith.constant 0 : i32
    %c0_i32_0 = arith.constant 0 : i32
    return %arg0, %c0_i32 : i32, i32
  }
}

</mosaic_0001>

<llo_original>
// kernel: tpu_custom_call.1
$region0: #{tpu_custom_call.1}
  #allocation0 [shape = 'u32[]', space=smem, size = 0x4, offset = 0x4, fixed_abs, tag = 'smem constant byte address 0x4 - core index']
  #allocation1 [shape = 'u32[144,128]{1,0:T(1,128)}', space=vmem, size = 0x12000, scoped, tag = 'internal scratch']
  %s0 = inlined_call_operand.hbm [shape: f32[16,128], index: 0, kind: input, shape index: {}]
  %s1 = inlined_call_operand.hbm [shape: f32[16,128], index: 1, kind: output, shape index: {0}]
  %s2 = inlined_call_operand.hbm [shape: f32[16,128], index: 2, kind: output, shape index: {1}]
  %3 = xla_tuple %s1, %s2
  %s4 = sld [smem:[#allocation0]]
  $region53: #{tpu_custom_call.1} parent=0
    _
  %s6 = ssub.s32 1, %s4
  %s7 = scalar_select 0, %s6, %s4
  $region1: #{tpu_custom_call.1} parent=0
    #allocation2 [shape = 'u8[8192]{0}', space=vmem, size = 0x2000, scoped, tag = 'input window, operand 0']
    #allocation3 [shape = 's32[2]{0}', space=sflag, size = 0x8, scoped, tag = 'scoped memory for tpu_custom_call.1']
    #allocation4 [shape = 's32[2]{0}', space=sflag, size = 0x8, scoped, tag = 'scoped memory for tpu_custom_call.1']
    #allocation5 [shape = 'u8[8192]{0}', space=vmem, size = 0x2000, scoped, tag = 'output window, operand 0']
    #allocation6 [shape = 'u8[8192]{0}', space=vmem, size = 0x2000, scoped, tag = 'output window, operand 1']
    #allocation7 [shape = 's32[2]{0}', space=sflag, size = 0x8, scoped, tag = 'scoped memory for tpu_custom_call.1']
    %8 = vsyncpa [#allocation3], 0
    %s9 = scalar_lea.sflag [#allocation3], 1
    %10 = vsyncpa %s9, 0
    %11 = vsyncpa [#allocation4], 0
    %s12 = scalar_lea.sflag [#allocation4], 1
    %13 = vsyncpa %s12, 0
    %14 = vsyncpa [#allocation7], 0
    %s15 = scalar_lea.sflag [#allocation7], 1
    %16 = vsyncpa %s15, 0
    loop: start=0, step=1, limit=4
    $region2: #{tpu_custom_call.1} parent=1 // loop_pre_header
      _
    $region3: #{tpu_custom_call.1} parent=1 // loop_header
      %s18 = sphi 0, %s22
      %p19 = scmp.ge.s32.totalorder %s18, 4
      %s25 = sphi 0, %s37
      %s26 = sphi 0, %s33
      %s27 = sphi 0, %s25
      %s28 = sphi 0, %s26
      %s29 = sphi 0, %s27
      %s30 = sphi 0, %s28
      %s42 = sphi 0, %s44
      %s45 = sphi 0, %s42
      %s46 = sphi 0, %s45
      %s62 = sphi 0, %s46
      %s68 = sphi 0, %s70
      %s71 = sphi 0, %s68
      %s72 = sphi 0, %s71
      %s88 = sphi 0, %s72
      %s94 = sphi 0, %s96
      %s97 = sphi 0, %s94
      %s98 = sphi 0, %s97
      %s114 = sphi 0, %s98
    $region4: #{tpu_custom_call.1} parent=1 // loop_header_branch
      %21 = sbr.rel (%p19) target = $region8
    $region5: #{tpu_custom_call.1} parent=1 // loop_body
      %s23 = ssub.s32 %s18, 1
      %s24 = ssub.s32 %s18, 2
      %s31 = sadd.s32 1, %s26
      %p32 = scmp.ge.s32.totalorder %s31, 1
      %s33 = scalar_select %p32, 0, %s31
      %s34 = sadd.s32 1, %s25
      %s35 = scalar_select %p32, %s34, %s25
      %p36 = scmp.ge.s32.totalorder %s35, 2
      %s37 = scalar_select %p36, 0, %s35
      %s38 = sadd.s32 %s25, %s26
      %s39 = sadd.s32 %s37, %s33
      %s40 = ssub.s32 %s38, %s39
      %p41 = scmp.eq.s32.totalorder %s40, 0
      %s43 = sadd.s32 %s42, 1
      %s44 = scalar_select %p41, %s42, %s43
      %p47 = pneg %p41
      %p48 = scmp.eq.s32.totalorder %s18, 1
      %p49 = por %p47, %p48
      %p50 = scmp.ne.s32.totalorder %s42, %s45
      %p51 = scmp.eq.s32.totalorder %s18, 0
      %p52 = por %p50, %p51
      %p53 = scmp.ne.s32.totalorder %s42, %s45
      %p54 = scmp.eq.s32.totalorder %s23, 1
      %p55 = por %p53, %p54
      %p56 = scmp.ne.s32.totalorder %s45, %s46
      %p57 = scmp.eq.s32.totalorder %s23, 0
      %p58 = por %p56, %p57
      %p59 = scmp.ne.s32.totalorder %s45, %s46
      %p60 = scmp.eq.s32.totalorder %s24, 1
      %p61 = por %p59, %p60
      %p63 = scmp.ne.s32.totalorder %s46, %s62
      %p64 = scmp.eq.s32.totalorder %s24, 0
      %p65 = por %p63, %p64
      %s66 = ssub.s32 %s25, %s37
      %p67 = scmp.eq.s32.totalorder %s66, 0
      %s69 = sadd.s32 %s68, 1
      %s70 = scalar_select %p67, %s68, %s69
      %p73 = pneg %p67
      %p74 = scmp.eq.s32.totalorder %s18, 1
      %p75 = por %p73, %p74
      %p76 = scmp.ne.s32.totalorder %s68, %s71
      %p77 = scmp.eq.s32.totalorder %s18, 0
      %p78 = por %p76, %p77
      %p79 = scmp.ne.s32.totalorder %s68, %s71
      %p80 = scmp.eq.s32.totalorder %s23, 1
      %p81 = por %p79, %p80
      %p82 = scmp.ne.s32.totalorder %s71, %s72
      %p83 = scmp.eq.s32.totalorder %s23, 0
      %p84 = por %p82, %p83
      %p85 = scmp.ne.s32.totalorder %s71, %s72
      %p86 = scmp.eq.s32.totalorder %s24, 1
      %p87 = por %p85, %p86
      %p89 = scmp.ne.s32.totalorder %s72, %s88
      %p90 = scmp.eq.s32.totalorder %s24, 0
      %p91 = por %p89, %p90
      %s92 = ssub.s32 %s25, %s37
      %p93 = scmp.eq.s32.totalorder %s92, 0
      %s95 = sadd.s32 %s94, 1
      %s96 = scalar_select %p93, %s94, %s95
      %p99 = pneg %p93
      %p100 = scmp.eq.s32.totalorder %s18, 1
      %p101 = por %p99, %p100
      %p102 = scmp.ne.s32.totalorder %s94, %s97
      %p103 = scmp.eq.s32.totalorder %s18, 0
      %p104 = por %p102, %p103
      %p105 = scmp.ne.s32.totalorder %s94, %s97
      %p106 = scmp.eq.s32.totalorder %s23, 1
      %p107 = por %p105, %p106
      %p108 = scmp.ne.s32.totalorder %s97, %s98
      %p109 = scmp.eq.s32.totalorder %s23, 0
      %p110 = por %p108, %p109
      %p111 = scmp.ne.s32.totalorder %s97, %s98
      %p112 = scmp.eq.s32.totalorder %s24, 1
      %p113 = por %p111, %p112
      %p115 = scmp.ne.s32.totalorder %s98, %s114
      %p116 = scmp.eq.s32.totalorder %s24, 0
      %p117 = por %p115, %p116
      %p118 = scmp.le.s32.totalorder 1, %s18
      %p119 = scmp.lt.s32.totalorder %s18, 3
      %p120 = pnand %p118, %p119
      %p121 = pneg %p120
      // Predicated region
      $region9: #{tpu_custom_call.1} parent=5 // pred_check
        _
      $region10: #{tpu_custom_call.1} parent=5 // pred_check_branch
        %123 = sbr.rel (%p120) target = $region12
      $region11: #{tpu_custom_call.1} parent=5 // pred_region
        %s124 = ssub.s32 %s18, 1
      $region12: #{tpu_custom_call.1} parent=5 // pred_fallthru
        _
      %p125 = scmp.lt.s32.totalorder %s18, 2
      // Predicated region
      $region13: #{tpu_custom_call.1} parent=5 // pred_check
        %p126 = pneg %p125
      $region14: #{tpu_custom_call.1} parent=5 // pred_check_branch
        %128 = sbr.rel (%p126) target = $region16
      $region15: #{tpu_custom_call.1} parent=5 // pred_region
        // Predicated region
        $region17: #{tpu_custom_call.1} parent=15 // pred_check
          %p129 = pneg %p52
        $region18: #{tpu_custom_call.1} parent=15 // pred_check_branch
          %131 = sbr.rel (%p129) target = $region20
        $region19: #{tpu_custom_call.1} parent=15 // pred_region
          %s132 = sand.u32 %s42, 1
          %s133 = scalar_lea.sflag [#allocation3], %s132
          %s134 = sand.u32 %s42, 1
          %s135 = smul.addr %s134, 8
          %s136 = scalar_lea.vmem [#allocation2], %s135
          %s137 = sadd.s32 %s25, %s26
          %s139 = ssub.s32 128, 128
          %140 = vsyncadd %s133, %s139
          %s141 = smul.addr %s137, 128
          %s142 = scalar_lea.hbm %s0, %s141
          %s144 = sshll.u32 %s136, 4
          %s145 = int_to_ptr.vmem [resolvable:$true] %s144
          %147 = dma.hbm_to_vmem [thread:$0]  %s142, 128, %s145, %s133
        $region20: #{tpu_custom_call.1} parent=15 // pred_fallthru
          _
      $region16: #{tpu_custom_call.1} parent=5 // pred_fallthru
        _
      %p148 = scmp.le.s32.totalorder 1, %s18
      %p149 = scmp.lt.s32.totalorder %s18, 3
      %p150 = pnand %p148, %p149
      %p151 = pneg %p150
      // Predicated region
      $region21: #{tpu_custom_call.1} parent=5 // pred_check
        _
      $region22: #{tpu_custom_call.1} parent=5 // pred_check_branch
        %153 = sbr.rel (%p150) target = $region24
      $region23: #{tpu_custom_call.1} parent=5 // pred_region
        %s154 = ssub.s32 %s18, 1
        %s155 = sand.u32 %s45, 1
        %s156 = scalar_lea.sflag [#allocation3], %s155
        %s157 = sand.u32 %s45, 1
        %s158 = smul.addr %s157, 8
        %s159 = scalar_lea.vmem [#allocation2], %s158
        // Predicated region
        $region25: #{tpu_custom_call.1} parent=23 // pred_check
          %p160 = pneg %p58
        $region26: #{tpu_custom_call.1} parent=23 // pred_check_branch
          %162 = sbr.rel (%p160) target = $region28
        $region27: #{tpu_custom_call.1} parent=23 // pred_region
          %163 = dma.done %s156, 128
        $region28: #{tpu_custom_call.1} parent=23 // pred_fallthru
          _
        %s164 = sand.u32 %s45, 1
        %s165 = scalar_lea.sflag [#allocation3], %s164
        %s166 = sand.u32 %s45, 1
        %s167 = smul.addr %s166, 8
        %s168 = scalar_lea.vmem [#allocation2], %s167
        %p169 = pneg %p58
        %p170 = pneg %p55
        %p171 = pneg %p84
        %p172 = pneg %p81
        %s173 = sand.u32 %s71, 1
        %s174 = scalar_lea.sflag [#allocation4], %s173
        %s175 = sand.u32 %s71, 1
        %s176 = smul.addr %s175, 8
        %s177 = scalar_lea.vmem [#allocation5], %s176
        %p178 = pneg %p110
        %p179 = pneg %p107
        %s180 = sand.u32 %s97, 1
        %s181 = scalar_lea.sflag [#allocation7], %s180
        %s182 = sand.u32 %s97, 1
        %s183 = smul.addr %s182, 8
        %s184 = scalar_lea.vmem [#allocation6], %s183
        %s185 = sadd.s32 %s27, %s28
        %p186 = scmp.eq.s32.totalorder %s28, 0
        // Predicated region
        $region29: #{tpu_custom_call.1} parent=23 // pred_check
          %p187 = pneg %p186
        $region30: #{tpu_custom_call.1} parent=23 // pred_check_branch
          %189 = sbr.rel (%p187) target = $region32
        $region31: #{tpu_custom_call.1} parent=23 // pred_region
          %190 = vst [vmem:[%s177] sm:$0xff] 0.0
          %191 = vst [vmem:[%s184] sm:$0xff] 0.0
        $region32: #{tpu_custom_call.1} parent=23 // pred_fallthru
          _
        %v192 = vld [vmem:[%s159] sm:$0xff]
        %v193 = vld [vmem:[%s177] sm:$0xff]
        %v194 = vadd.f32 %v192, 0.0
        %v195 = vadd.f32 %v193, %v194
        %196 = vst [vmem:[%s177] sm:$0xff] %v195
        %v197 = vld [vmem:[%s184] sm:$0xff]
        %v198 = vmul.f32 %v192, %v192
        %v199 = vadd.f32 %v198, 0.0
        %v200 = vadd.f32 %v197, %v199
        %201 = vst [vmem:[%s184] sm:$0xff] %v200
        %s202 = sand.u32 %s71, 1
        %s203 = scalar_lea.sflag [#allocation4], %s202
        %s204 = sand.u32 %s71, 1
        %s205 = smul.addr %s204, 8
        %s206 = scalar_lea.vmem [#allocation5], %s205
        %s207 = sand.u32 %s97, 1
        %s208 = scalar_lea.sflag [#allocation7], %s207
        %s209 = sand.u32 %s97, 1
        %s210 = smul.addr %s209, 8
        %s211 = scalar_lea.vmem [#allocation6], %s210
        // Predicated region
        $region33: #{tpu_custom_call.1} parent=23 // pred_check
          %p212 = pneg %p81
        $region34: #{tpu_custom_call.1} parent=23 // pred_check_branch
          %214 = sbr.rel (%p212) target = $region36
        $region35: #{tpu_custom_call.1} parent=23 // pred_region
          %s216 = ssub.s32 128, 128
          %217 = vsyncadd %s203, %s216
          %s218 = smul.addr %s27, 128
          %s219 = scalar_lea.hbm %s1, %s218
          %s221 = sshll.u32 %s206, 4
          %s222 = int_to_ptr.vmem [resolvable:$true] %s221
          %224 = dma.vmem_to_hbm [thread:$0]  %s222, 128, %s219, %s203
        $region36: #{tpu_custom_call.1} parent=23 // pred_fallthru
          _
        // Predicated region
        $region37: #{tpu_custom_call.1} parent=23 // pred_check
          %p225 = pneg %p107
        $region38: #{tpu_custom_call.1} parent=23 // pred_check_branch
          %227 = sbr.rel (%p225) target = $region40
        $region39: #{tpu_custom_call.1} parent=23 // pred_region
          %s229 = ssub.s32 128, 128
          %230 = vsyncadd %s208, %s229
          %s231 = smul.addr %s27, 128
          %s232 = scalar_lea.hbm %s2, %s231
          %s234 = sshll.u32 %s211, 4
          %s235 = int_to_ptr.vmem [resolvable:$true] %s234
          %237 = dma.vmem_to_hbm [thread:$0]  %s235, 128, %s232, %s208
        $region40: #{tpu_custom_call.1} parent=23 // pred_fallthru
          _
      $region24: #{tpu_custom_call.1} parent=5 // pred_fallthru
        _
      %p238 = scmp.le.s32.totalorder 2, %s18
      // Predicated region
      $region41: #{tpu_custom_call.1} parent=5 // pred_check
        %p239 = pneg %p238
      $region42: #{tpu_custom_call.1} parent=5 // pred_check_branch
        %241 = sbr.rel (%p239) target = $region44
      $region43: #{tpu_custom_call.1} parent=5 // pred_region
        %s242 = ssub.s32 %s18, 2
        // Predicated region
        $region45: #{tpu_custom_call.1} parent=43 // pred_check
          %p243 = pneg %p87
        $region46: #{tpu_custom_call.1} parent=43 // pred_check_branch
          %245 = sbr.rel (%p243) target = $region48
        $region47: #{tpu_custom_call.1} parent=43 // pred_region
          %s246 = sand.u32 %s72, 1
          %s247 = scalar_lea.sflag [#allocation4], %s246
          %s248 = sand.u32 %s72, 1
          %s249 = smul.addr %s248, 8
          %s250 = scalar_lea.vmem [#allocation5], %s249
          %251 = dma.done %s247, 128
        $region48: #{tpu_custom_call.1} parent=43 // pred_fallthru
          _
        // Predicated region
        $region49: #{tpu_custom_call.1} parent=43 // pred_check
          %p252 = pneg %p113
        $region50: #{tpu_custom_call.1} parent=43 // pred_check_branch
          %254 = sbr.rel (%p252) target = $region52
        $region51: #{tpu_custom_call.1} parent=43 // pred_region
          %s255 = sand.u32 %s98, 1
          %s256 = scalar_lea.sflag [#allocation7], %s255
          %s257 = sand.u32 %s98, 1
          %s258 = smul.addr %s257, 8
          %s259 = scalar_lea.vmem [#allocation6], %s258
          %260 = dma.done %s256, 128
        $region52: #{tpu_custom_call.1} parent=43 // pred_fallthru
          _
      $region44: #{tpu_custom_call.1} parent=5 // pred_fallthru
        _
    $region6: #{tpu_custom_call.1} parent=1 // loop_footer
      %s22 = sadd.s32 1, %s18
    $region7: #{tpu_custom_call.1} parent=1 // loop_footer_branch
      %17 = sbr.rel target = $region3
    $region8: #{tpu_custom_call.1} parent=1 // loop_exit
      _
    %261 = vsyncpa [#allocation3], 1
    %s262 = scalar_lea.sflag [#allocation3], 1
    %263 = vsyncpa %s262, 1
    %264 = vsyncpa [#allocation4], 1
    %s265 = scalar_lea.sflag [#allocation4], 1
    %266 = vsyncpa %s265, 1
    %267 = vsyncpa [#allocation7], 1
    %s268 = scalar_lea.sflag [#allocation7], 1
    %269 = vsyncpa %s268, 1

</llo_original>
